<compile_context>
chip_gen: v7x
topology: tpu7x:2x2x1
jax: 0.10.0
libtpu: 0.0.40
codegen_flags: <defaults>
</compile_context>

<pallas_src>
import jax
import jax.numpy as jnp
from jax.experimental import pallas as pl
from jax.experimental.pallas import tpu as pltpu

_MIB = 1024 * 1024


# ---------------------------------------------------------------------------
# Kernels
# ---------------------------------------------------------------------------

def _bn_stats_kernel(x_ref, sum_ref, sumsq_ref):
    """Accumulate per-channel sum and sum-of-squares.

    x_ref: (TN, TC, TL).  sum_ref / sumsq_ref: (TC, 1) resident output blocks
    (same block index for every (n, l) step of a given channel block).
    """
    ni = pl.program_id(1)
    ti = pl.program_id(2)

    @pl.when(jnp.logical_and(ni == 0, ti == 0))
    def _init():
        sum_ref[...] = jnp.zeros_like(sum_ref)
        sumsq_ref[...] = jnp.zeros_like(sumsq_ref)

    x = x_ref[...].astype(jnp.float32)                       # (TN, TC, TL)
    # Reduce over N first (pure VPU elementwise adds on (TC, TL) vregs), then
    # a single XLU lane-collapse per quantity.
    xs = jnp.sum(x, axis=0)                                  # (TC, TL)
    xq = jnp.sum(x * x, axis=0)                              # (TC, TL)
    sum_ref[...] += jnp.sum(xs, axis=-1, keepdims=True)      # (TC, 1)
    sumsq_ref[...] += jnp.sum(xq, axis=-1, keepdims=True)    # (TC, 1)


def _bn_apply_relu_kernel(x_ref, scale_ref, offset_ref, o_ref):
    """y = relu(x * scale + offset) with per-channel scale/offset."""
    x = x_ref[...].astype(jnp.float32)                       # (TN, TC, TL)
    y = x * scale_ref[...] + offset_ref[...]                 # (1, TC, 1) bcast
    o_ref[...] = jnp.maximum(y, 0.0).astype(o_ref.dtype)


# ---------------------------------------------------------------------------
# Tiling / VMEM budgeting
# ---------------------------------------------------------------------------

def _vmem_budget():
    """(per-block byte cap, vmem_limit_bytes, physical VMEM) per generation."""
    phys = 64 * _MIB                      # conservative default (v7x-sized)
    try:
        phys = int(getattr(pltpu.get_tpu_info(), "vmem_capacity_bytes", phys))
    except Exception:
        pass
    if phys >= 96 * _MIB:                 # v5e / v6e: 128 MiB physical VMEM
        return 6 * _MIB, 64 * _MIB, phys
    # v7x: 64 MiB physical — keep blocks small, leave compiler headroom.
    return 2 * _MIB, 40 * _MIB, phys


def _vmem_limit(base, block_bytes, phys):
    """Only exceeds `base` for pathological shapes whose smallest legal block
    is already bigger than the cap (e.g. huge L not divisible by 128)."""
    need = 6 * block_bytes + 4 * _MIB
    return int(min(max(base, need), phys - 8 * _MIB))


def _choose_tiles(n, c, l, elem_bytes, max_block_bytes):
    """Pick (TN, TC, TL) for the (N, C, L) view of x.

    TL: multiple of 128 dividing L (or L itself when L % 128 != 0).
    TC: multiple of 8 dividing C (or C itself).
    TN: any divisor of N.
    The byte cap is enforced by shrinking TC and TN too — no silent escape.
    """
    if l % 128 == 0:
        tl_cands = [d for d in range(l, 0, -128) if l % d == 0]
    else:
        tl_cands = [l]                    # full-extent lane block is always legal
    if c % 8 == 0:
        tc_cands = [d for d in range(c, 0, -8) if c % d == 0]
    else:
        tc_cands = [c]
    tn_cands = [d for d in range(n, 0, -1) if n % d == 0]

    min_tc, min_tn = tc_cands[-1], tn_cands[-1]

    def fits(tn, tc, tl):
        return tn * tc * tl * elem_bytes <= max_block_bytes

    # Maximize the lane tile first (lane-dense loads/stores are the biggest
    # single lever), then channels, then batch.
    tl = next((d for d in tl_cands if fits(min_tn, min_tc, d)), tl_cands[-1])
    tc = next((d for d in tc_cands if fits(min_tn, d, tl)), tc_cands[-1])
    tn = next((d for d in tn_cands if fits(d, tc, tl)), tn_cands[-1])
    return tn, tc, tl


def _x_block_spec(block_shape, num_steps, block_bytes):
    """BlockSpec for the streamed x input.  Deepen the pipeline when blocks are
    forced small (large N*C) so per-step DMA issue latency stays hidden."""
    idx = lambda ci, ni, ti: (ni, ci, ti)
    if num_steps >= 4 and block_bytes <= 512 * 1024:
        return pl.BlockSpec(block_shape, idx, pipeline_mode=pl.Buffered(3))
    return pl.BlockSpec(block_shape, idx)


# ---------------------------------------------------------------------------
# Wrapper
# ---------------------------------------------------------------------------

def batch_norm_relu(x_nchw, gamma, beta, eps=1e-5):
    """Training-mode BatchNorm2d + ReLU.  x: (N,C,H,W); gamma, beta: (C,)."""
    n, c, h, w = x_nchw.shape
    l = h * w
    elem_bytes = jnp.dtype(x_nchw.dtype).itemsize
    # Free view of contiguous NCHW: H*W lands on the lane axis.
    x3 = x_nchw.reshape(n, c, l)

    block_cap, vmem_base, phys = _vmem_budget()

    # --- Call 1: per-channel sum / sum-of-squares ---------------------------
    # No streamed output -> afford ~2x larger blocks than the normalize pass.
    tn_s, tc_s, tl_s = _choose_tiles(n, c, l, elem_bytes, 2 * block_cap)
    grid_s = (c // tc_s, n // tn_s, l // tl_s)
    blk_bytes_s = tn_s * tc_s * tl_s * elem_bytes
    steps_s = grid_s[0] * grid_s[1] * grid_s[2]

    sums, sumsqs = pl.pallas_call(
        _bn_stats_kernel,
        out_shape=(jax.ShapeDtypeStruct((c, 1), jnp.float32),
                   jax.ShapeDtypeStruct((c, 1), jnp.float32)),
        grid_spec=pltpu.PrefetchScalarGridSpec(
            num_scalar_prefetch=0,
            grid=grid_s,                               # (channel, batch, lane)
            in_specs=[_x_block_spec((tn_s, tc_s, tl_s), steps_s, blk_bytes_s)],
            out_specs=[pl.BlockSpec((tc_s, 1), lambda ci, ni, ti: (ci, 0)),
                       pl.BlockSpec((tc_s, 1), lambda ci, ni, ti: (ci, 0))],
        ),
        compiler_params=pltpu.CompilerParams(
            # Channel blocks are independent; (batch, lane) carry the reduction.
            dimension_semantics=("parallel", "arbitrary", "arbitrary"),
            vmem_limit_bytes=_vmem_limit(vmem_base, blk_bytes_s, phys),
        ),
    )(x3)

    # --- Finalize statistics in plain JAX (C-sized, negligible) -------------
    count = float(n * l)
    mean = sums / count                                       # (C, 1)
    # TODO(synk): E[x^2]-E[x]^2 in f32 can cancel for huge N*H*W when
    #             |mean| >> std; a shifted accumulation would be more robust.
    var = jnp.maximum(sumsqs / count - mean * mean, 0.0)
    inv_std = jax.lax.rsqrt(var + float(eps))
    scale = gamma.astype(jnp.float32).reshape(c, 1) * inv_std
    offset = beta.astype(jnp.float32).reshape(c, 1) - mean * scale
    scale3 = scale.reshape(1, c, 1)
    offset3 = offset.reshape(1, c, 1)

    # --- Call 2: y = relu(x * scale + offset), fully parallel grid ----------
    tn_a, tc_a, tl_a = _choose_tiles(n, c, l, elem_bytes, block_cap)
    grid_a = (c // tc_a, n // tn_a, l // tl_a)
    blk_bytes_a = tn_a * tc_a * tl_a * elem_bytes
    steps_a = grid_a[0] * grid_a[1] * grid_a[2]

    out3 = pl.pallas_call(
        _bn_apply_relu_kernel,
        out_shape=jax.ShapeDtypeStruct((n, c, l), x3.dtype),
        grid_spec=pltpu.PrefetchScalarGridSpec(
            num_scalar_prefetch=0,
            grid=grid_a,
            in_specs=[
                _x_block_spec((tn_a, tc_a, tl_a), steps_a, blk_bytes_a),
                pl.BlockSpec((1, tc_a, 1), lambda ci, ni, ti: (0, ci, 0)),
                pl.BlockSpec((1, tc_a, 1), lambda ci, ni, ti: (0, ci, 0)),
            ],
            out_specs=pl.BlockSpec((tn_a, tc_a, tl_a),
                                   lambda ci, ni, ti: (ni, ci, ti)),
        ),
        compiler_params=pltpu.CompilerParams(
            # Every block is independent -> both TensorCores on v7x.
            dimension_semantics=("parallel", "parallel", "parallel"),
            vmem_limit_bytes=_vmem_limit(vmem_base, blk_bytes_a, phys),
        ),
    )(x3, scale3, offset3)

    return out3.reshape(n, c, h, w)


if __name__ == "__main__":
    key = jax.random.PRNGKey(0)
    kx, kg, kb = jax.random.split(key, 3)

    N, C, H, W = 2, 4, 16, 16
    x = jax.random.normal(kx, (N, C, H, W), dtype=jnp.float32)
    # Non-trivial affine parameters to exercise the scale/offset path.
    gamma = jax.random.normal(kg, (C,), dtype=jnp.float32) * 0.1 + 1.0
    beta = jax.random.normal(kb, (C,), dtype=jnp.float32) * 0.1

    out = batch_norm_relu(x, gamma, beta, eps=1e-5)
    out = jax.block_until_ready(out)

    # Pure-JAX reference (training-mode BatchNorm2d + ReLU).
    mean = jnp.mean(x, axis=(0, 2, 3), keepdims=True)
    var = jnp.mean((x - mean) ** 2, axis=(0, 2, 3), keepdims=True)
    ref = (x - mean) * jax.lax.rsqrt(var + 1e-5)
    ref = ref * gamma.reshape(1, C, 1, 1) + beta.reshape(1, C, 1, 1)
    ref = jnp.maximum(ref, 0.0)
    assert out.shape == (N, C, H, W)
    assert jnp.allclose(out, ref, atol=1e-4, rtol=1e-4), float(
        jnp.max(jnp.abs(out - ref)))

    print("KERNEL_OK")
</pallas_src>

<mosaic_0001>
module attributes {stable_mosaic.version = 11 : i64} {
  func.func @_bn_stats_kernel(%arg0: i32, %arg1: i32, %arg2: i32, %arg3: memref<2x4x256xf32, #tpu.memory_space<vmem>>, %arg4: memref<4x1xf32, #tpu.memory_space<vmem>>, %arg5: memref<4x1xf32, #tpu.memory_space<vmem>>) attributes {dimension_semantics = [#tpu.dimension_semantics<parallel>, #tpu.dimension_semantics<arbitrary>, #tpu.dimension_semantics<arbitrary>], iteration_bounds = array<i64: 1, 1, 1>, scalar_prefetch = 0 : i64, scratch_operands = 0 : i64, tpu.core_type = #tpu.core_type<tc>, window_params = [{transform_indices = @transform_0, window_bounds = array<i64: 2, 4, 256>}, {transform_indices = @transform_1, window_bounds = array<i64: 4, 1>}, {transform_indices = @transform_2, window_bounds = array<i64: 4, 1>}]} {
    %c0_i32 = arith.constant 0 : i32
    %0 = arith.cmpi eq, %arg1, %c0_i32 : i32
    %c0_i32_0 = arith.constant 0 : i32
    %1 = arith.cmpi eq, %arg2, %c0_i32_0 : i32
    %2 = arith.andi %0, %1 : i1
    %3 = arith.extui %2 : i1 to i32
    %c0_i32_1 = arith.constant 0 : i32
    %4 = arith.cmpi ne, %3, %c0_i32_1 : i32
    scf.if %4 {
      %cst_15 = arith.constant 0.000000e+00 : f32
      %19 = vector.broadcast %cst_15 : f32 to vector<4x1xf32>
      %c0_16 = arith.constant 0 : index
      %c0_17 = arith.constant 0 : index
      %20 = vector.load %arg4[%c0_16, %c0_17] : memref<4x1xf32, #tpu.memory_space<vmem>>, vector<4x1xf32>
      tpu.vector_store %arg4[%c0_16, %c0_17], %19 {strides = array<i32>} : memref<4x1xf32, #tpu.memory_space<vmem>>, vector<4x1xf32>,
      %cst_18 = arith.constant 0.000000e+00 : f32
      %21 = vector.broadcast %cst_18 : f32 to vector<4x1xf32>
      %c0_19 = arith.constant 0 : index
      %c0_20 = arith.constant 0 : index
      %22 = vector.load %arg5[%c0_19, %c0_20] : memref<4x1xf32, #tpu.memory_space<vmem>>, vector<4x1xf32>
      tpu.vector_store %arg5[%c0_19, %c0_20], %21 {strides = array<i32>} : memref<4x1xf32, #tpu.memory_space<vmem>>, vector<4x1xf32>,
    } else {
    }
    %c0 = arith.constant 0 : index
    %c0_2 = arith.constant 0 : index
    %c0_3 = arith.constant 0 : index
    %5 = vector.load %arg3[%c0, %c0_2, %c0_3] : memref<2x4x256xf32, #tpu.memory_space<vmem>>, vector<2x4x256xf32>
    %cst = arith.constant dense<0.000000e+00> : vector<4x256xf32>
    %6 = vector.multi_reduction <add>, %5, %cst [0] : vector<2x4x256xf32> to vector<4x256xf32>
    %7 = arith.mulf %5, %5 : vector<2x4x256xf32>
    %cst_4 = arith.constant dense<0.000000e+00> : vector<4x256xf32>
    %8 = vector.multi_reduction <add>, %7, %cst_4 [0] : vector<2x4x256xf32> to vector<4x256xf32>
    %c0_5 = arith.constant 0 : index
    %c0_6 = arith.constant 0 : index
    %9 = vector.load %arg4[%c0_5, %c0_6] : memref<4x1xf32, #tpu.memory_space<vmem>>, vector<4x1xf32>
    %cst_7 = arith.constant dense<0.000000e+00> : vector<4xf32>
    %10 = vector.multi_reduction <add>, %6, %cst_7 [1] : vector<4x256xf32> to vector<4xf32>
    %11 = vector.shape_cast %10 : vector<4xf32> to vector<4x1xf32>
    %12 = arith.addf %9, %11 : vector<4x1xf32>
    %c0_8 = arith.constant 0 : index
    %c0_9 = arith.constant 0 : index
    %13 = vector.load %arg4[%c0_8, %c0_9] : memref<4x1xf32, #tpu.memory_space<vmem>>, vector<4x1xf32>
    tpu.vector_store %arg4[%c0_8, %c0_9], %12 {strides = array<i32>} : memref<4x1xf32, #tpu.memory_space<vmem>>, vector<4x1xf32>,
    %c0_10 = arith.constant 0 : index
    %c0_11 = arith.constant 0 : index
    %14 = vector.load %arg5[%c0_10, %c0_11] : memref<4x1xf32, #tpu.memory_space<vmem>>, vector<4x1xf32>
    %cst_12 = arith.constant dense<0.000000e+00> : vector<4xf32>
    %15 = vector.multi_reduction <add>, %8, %cst_12 [1] : vector<4x256xf32> to vector<4xf32>
    %16 = vector.shape_cast %15 : vector<4xf32> to vector<4x1xf32>
    %17 = arith.addf %14, %16 : vector<4x1xf32>
    %c0_13 = arith.constant 0 : index
    %c0_14 = arith.constant 0 : index
    %18 = vector.load %arg5[%c0_13, %c0_14] : memref<4x1xf32, #tpu.memory_space<vmem>>, vector<4x1xf32>
    tpu.vector_store %arg5[%c0_13, %c0_14], %17 {strides = array<i32>} : memref<4x1xf32, #tpu.memory_space<vmem>>, vector<4x1xf32>,
    return
  }
  func.func @transform_0(%arg0: i32, %arg1: i32, %arg2: i32) -> (i32, i32, i32) {
    %c0_i32 = arith.constant 0 : i32
    return %arg1, %arg0, %arg2 : i32, i32, i32
  }
  func.func @transform_1(%arg0: i32, %arg1: i32, %arg2: i32) -> (i32, i32) {
    %c0_i32 = arith.constant 0 : i32
    %c0_i32_0 = arith.constant 0 : i32
    return %arg0, %c0_i32 : i32, i32
  }
  func.func @transform_2(%arg0: i32, %arg1: i32, %arg2: i32) -> (i32, i32) {
    %c0_i32 = arith.constant 0 : i32
    %c0_i32_0 = arith.constant 0 : i32
    return %arg0, %c0_i32 : i32, i32
  }
}

</mosaic_0001>

<llo_original>
// kernel: tpu_custom_call.1
$region0: #{tpu_custom_call.1}
  #allocation0 [shape = 'u32[]', space=smem, size = 0x4, offset = 0x4, fixed_abs, tag = 'smem constant byte address 0x4 - core index']
  #allocation1 [shape = 'u32[144,128]{1,0:T(1,128)}', space=vmem, size = 0x12000, scoped, tag = 'internal scratch']
  %s0 = inlined_call_operand.hbm [shape: f32[2,4,256], index: 0, kind: input, shape index: {}]
  %s1 = inlined_call_operand.vmem [shape: f32[4,1], index: 1, kind: output, shape index: {0}]
  %s2 = inlined_call_operand.vmem [shape: f32[4,1], index: 2, kind: output, shape index: {1}]
  %3 = xla_tuple %s1, %s2
  %s4 = sld [smem:[#allocation0]]
  $region30: #{tpu_custom_call.1} parent=0
    _
  %s6 = ssub.s32 1, %s4
  %s7 = scalar_select 0, %s6, %s4
  $region1: #{tpu_custom_call.1} parent=0
    #allocation2 [shape = 'u8[8192]{0}', space=vmem, size = 0x2000, scoped, tag = 'input window, operand 0, single buffered']
    #allocation3 [shape = 's32[1]{0}', space=sflag, size = 0x4, scoped, tag = 'scoped memory for tpu_custom_call.1']
    %8 = vsyncpa [#allocation3], 0
    // Predicated region
    $region2: #{tpu_custom_call.1} parent=1 // pred_check
      _
    $region3: #{tpu_custom_call.1} parent=1 // pred_check_branch
      %10 = sbr.rel (0) target = $region5
    $region4: #{tpu_custom_call.1} parent=1 // pred_region
      %s12 = ssub.s32 256, 256
      %13 = vsyncadd [#allocation3], %s12
      %s14 = sshll.u32 [#allocation2], 4
      %s15 = int_to_ptr.vmem [resolvable:$true] %s14
      %20 = dma.hbm_to_vmem [thread:$0]  %s0, 256, %s15, [#allocation3], 128, 128, 8
    $region5: #{tpu_custom_call.1} parent=1 // pred_fallthru
      _
    // Predicated region
    $region6: #{tpu_custom_call.1} parent=1 // pred_check
      _
    $region7: #{tpu_custom_call.1} parent=1 // pred_check_branch
      %22 = sbr.rel (0) target = $region9
    $region8: #{tpu_custom_call.1} parent=1 // pred_region
      %23 = dma.done [#allocation3], 256
    $region9: #{tpu_custom_call.1} parent=1 // pred_fallthru
      _
    %p24 = scmp.eq.s32.totalorder 0, 0
    %p25 = scmp.eq.s32.totalorder 0, 0
    %p26 = pnand %p24, %p25
    %p27 = pneg %p26
    // Predicated region
    $region10: #{tpu_custom_call.1} parent=1 // pred_check
      _
    $region11: #{tpu_custom_call.1} parent=1 // pred_check_branch
      %29 = sbr.rel (%p26) target = $region13
    $region12: #{tpu_custom_call.1} parent=1 // pred_region
      %vm30 = vcmask 3072
      %31 = vst.msk [vmem:[%s1] sm:$0xf] %vm30, 0.0
      %32 = vst.msk [vmem:[%s2] sm:$0xf] %vm30, 0.0
    $region13: #{tpu_custom_call.1} parent=1 // pred_fallthru
      _
    %v33 = vld [vmem:[#allocation2] sm:$0xff]
    %v34 = vld [vmem:[#allocation2 + $0x8] sm:$0xff]
    %v37 = vcombine.high %v33, %v33
    %v38 = vcombine.high %v34, %v34
    %vm41 = vcmask 1043456
    %v42 = vsel %vm41, %v33, 0.0
    %v43 = vsel %vm41, %v34, 0.0
    %v44 = vadd.f32 %v42, %v43
    %v45 = vsel %vm41, %v37, 0.0
    %v46 = vsel %vm41, %v38, 0.0
    %v47 = vadd.f32 %v45, %v46
    %v48 = vmul.f32 %v33, %v33
    %v49 = vmul.f32 %v34, %v34
    %v52 = vcombine.high %v48, %v48
    %v53 = vcombine.high %v49, %v49
    %v56 = vsel %vm41, %v48, 0.0
    %v57 = vsel %vm41, %v49, 0.0
    %v58 = vadd.f32 %v56, %v57
    %v59 = vsel %vm41, %v52, 0.0
    %v60 = vsel %vm41, %v53, 0.0
    %v61 = vadd.f32 %v59, %v60
    %v62 = vld [vmem:[%s1] sm:$0xf]
    %v63 = vsel %vm41, %v44, 0.0
    %v64 = vsel %vm41, %v47, 0.0
    %v65 = vadd.f32 %v63, %v64
    %66 = vadd.xlane.f32.xlu0 %v65
    %v67 = vpop.xlane.xlu0 %66
    %v68 = vadd.f32 %v62, %v67
    %vm69 = vcmask 3072
    %70 = vst.msk [vmem:[%s1] sm:$0xf] %vm69, %v68
    %v71 = vld [vmem:[%s2] sm:$0xf]
    %v72 = vsel %vm41, %v58, 0.0
    %v73 = vsel %vm41, %v61, 0.0
    %v74 = vadd.f32 %v72, %v73
    %75 = vadd.xlane.f32.xlu0 %v74
    %v76 = vpop.xlane.xlu0 %75
    %v77 = vadd.f32 %v71, %v76
    %78 = vst.msk [vmem:[%s2] sm:$0xf] %vm69, %v77
    // Predicated region
    $region14: #{tpu_custom_call.1} parent=1 // pred_check
      _
    $region15: #{tpu_custom_call.1} parent=1 // pred_check_branch
      %80 = sbr.rel (0) target = $region17
    $region16: #{tpu_custom_call.1} parent=1 // pred_region
      _
    $region17: #{tpu_custom_call.1} parent=1 // pred_fallthru
      _
    // Predicated region
    $region18: #{tpu_custom_call.1} parent=1 // pred_check
      _
    $region19: #{tpu_custom_call.1} parent=1 // pred_check_branch
      %82 = sbr.rel (0) target = $region21
    $region20: #{tpu_custom_call.1} parent=1 // pred_region
      _
    $region21: #{tpu_custom_call.1} parent=1 // pred_fallthru
      _
    // Predicated region
    $region22: #{tpu_custom_call.1} parent=1 // pred_check
      _
    $region23: #{tpu_custom_call.1} parent=1 // pred_check_branch
      %84 = sbr.rel (0) target = $region25
    $region24: #{tpu_custom_call.1} parent=1 // pred_region
      _
    $region25: #{tpu_custom_call.1} parent=1 // pred_fallthru
      _
    // Predicated region
    $region26: #{tpu_custom_call.1} parent=1 // pred_check
      _
    $region27: #{tpu_custom_call.1} parent=1 // pred_check_branch
      %86 = sbr.rel (0) target = $region29
    $region28: #{tpu_custom_call.1} parent=1 // pred_region
      _
    $region29: #{tpu_custom_call.1} parent=1 // pred_fallthru
      _
    %87 = vsyncpa [#allocation3], 1

</llo_original>
